<compile_context>
chip_gen: v5e
topology: v5e:2x2
jax: 0.10.0
libtpu: 0.0.40
codegen_flags: <defaults>
</compile_context>

<pallas_src>
import math

import jax
import jax.numpy as jnp
from jax.experimental import pallas as pl
from jax.experimental.pallas import tpu as pltpu


def _round_up(x, m):
    return (x + m - 1) // m * m


def _kv_kernel(x_ref, wk_ref, wv_ref, bk_ref, bv_ref, k_ref, v_ref):
    # x_ref : (tm, E)  feature tile at its native dtype (cast here, under DMA)
    # wk_ref: (E, E)   Wk^T, compute dtype (resident across the grid)
    # wv_ref: (E, E)   Wv^T, compute dtype (resident across the grid)
    # bk_ref: (1, E)   f32 bias
    # bv_ref: (1, E)   f32 bias
    # k_ref, v_ref: (tm, E) output tiles
    x = x_ref[...].astype(wk_ref.dtype)

    k = jnp.dot(x, wk_ref[...], preferred_element_type=jnp.float32) + bk_ref[...]
    k_ref[...] = k.astype(k_ref.dtype)

    v = jnp.dot(x, wv_ref[...], preferred_element_type=jnp.float32) + bv_ref[...]
    v_ref[...] = v.astype(v_ref.dtype)


def prepare_kv_params(wk, bk, wv, bv, compute_dtype=jnp.bfloat16):
    """One-time parameter prep (do NOT call per forward pass).

    wk/wv are nn.Linear weights in (out, in) convention; bk/bv are (E,).
    Returns (wk_t, wv_t, bk2, bv2): transposed compute-dtype weights (E, E)
    and f32 biases reshaped to (1, E).
    """
    E = wk.shape[0]
    wk_t = jnp.asarray(wk).T.astype(compute_dtype)            # (E, E)
    wv_t = jnp.asarray(wv).T.astype(compute_dtype)            # (E, E)
    bk2 = jnp.asarray(bk).reshape(1, E).astype(jnp.float32)
    bv2 = jnp.asarray(bv).reshape(1, E).astype(jnp.float32)
    return wk_t, wv_t, bk2, bv2


def kv_feature_generator(feature, wk_t, wv_t, bk2, bv2, *, tm=1024,
                         out_dtype=None):
    """feature: [B, W, T, E]; params from prepare_kv_params.
    Returns (k_feature, v_feature), each [B, W, T, E] in out_dtype
    (defaults to feature.dtype; pass jnp.bfloat16 if downstream is bf16)."""
    B, W, T, E = feature.shape
    rows = B * W * T
    if out_dtype is None:
        out_dtype = feature.dtype
    compute_dtype = wk_t.dtype

    # Pure reshape (no cast, no copy of the dominant stream).
    x2d = feature.reshape(rows, E)

    in_itemsize = jnp.dtype(feature.dtype).itemsize
    out_itemsize = jnp.dtype(out_dtype).itemsize
    w_itemsize = jnp.dtype(compute_dtype).itemsize

    # --- Row tile selection -------------------------------------------------
    # Aim for >= 2 grid steps (v7x has 2 TensorCores sharded over the
    # "parallel" axis); never exceed the 8-aligned row count (tiny inputs).
    target_two_steps = _round_up(max(pl.cdiv(rows, 2), 8), 256)
    tm_eff = min(tm, target_two_steps, _round_up(rows, 8))
    tm_eff = max(tm_eff, 8)

    def vmem_bytes(t):
        return (2 * E * E * w_itemsize          # resident Wk^T + Wv^T
                + 2 * E * 4                     # f32 biases
                + 2 * t * E * in_itemsize       # x double buffer
                + 2 * 2 * t * E * out_itemsize  # k + v double buffers
                + 2 * t * E * 4)                # f32 matmul intermediates

    # Conservative per-TensorCore VMEM cap (v7x has only 64 MiB physical).
    try:
        phys_vmem = pltpu.get_tpu_info().vmem_capacity_bytes
    except Exception:
        phys_vmem = 64 * 1024 * 1024
    vmem_cap = int(min(max(phys_vmem * 0.7, 32 * 1024 * 1024), 96 * 1024 * 1024))

    # Shrink the row tile (multiples of 256 -> full MXU waves) until we fit.
    while tm_eff > 256 and vmem_bytes(tm_eff) > vmem_cap:
        tm_eff = _round_up(tm_eff // 2, 256)

    # Always set an explicit scoped-VMEM limit (v5e default is only 16 MiB).
    vmem_limit = int(min(max(1.3 * vmem_bytes(tm_eff), 16 * 1024 * 1024),
                         vmem_cap))

    grid = (pl.cdiv(rows, tm_eff),)

    cost = pl.CostEstimate(
        flops=4 * rows * E * E,                     # two (rows,E)x(E,E) GEMMs
        transcendentals=0,
        bytes_accessed=(rows * E * in_itemsize      # read feature once
                        + 2 * rows * E * out_itemsize   # write k, v
                        + 2 * E * E * w_itemsize    # read weights
                        + 2 * E * 4),               # read biases
    )

    k2d, v2d = pl.pallas_call(
        _kv_kernel,
        out_shape=(
            jax.ShapeDtypeStruct((rows, E), out_dtype),
            jax.ShapeDtypeStruct((rows, E), out_dtype),
        ),
        grid_spec=pltpu.PrefetchScalarGridSpec(
            num_scalar_prefetch=0,
            grid=grid,
            in_specs=[
                pl.BlockSpec((tm_eff, E), lambda i: (i, 0)),   # x tile
                pl.BlockSpec((E, E), lambda i: (0, 0)),        # Wk^T (resident)
                pl.BlockSpec((E, E), lambda i: (0, 0)),        # Wv^T (resident)
                pl.BlockSpec((1, E), lambda i: (0, 0)),        # bk
                pl.BlockSpec((1, E), lambda i: (0, 0)),        # bv
            ],
            out_specs=[
                pl.BlockSpec((tm_eff, E), lambda i: (i, 0)),   # k
                pl.BlockSpec((tm_eff, E), lambda i: (i, 0)),   # v
            ],
        ),
        compiler_params=pltpu.CompilerParams(
            dimension_semantics=("parallel",),
            vmem_limit_bytes=vmem_limit,
        ),
        cost_estimate=cost,
    )(x2d, wk_t, wv_t, bk2, bv2)

    return k2d.reshape(B, W, T, E), v2d.reshape(B, W, T, E)


def _xavier_uniform(key, shape):
    # nn.init.xavier_uniform_ for a Linear weight of shape (out, in)
    fan_out, fan_in = shape
    bound = math.sqrt(6.0 / (fan_in + fan_out))
    return jax.random.uniform(key, shape, jnp.float32, -bound, bound)


if __name__ == "__main__":
    B, W, T, E = 2, 4, 8, 32  # batches, windows, tokens, embed_dim

    root = jax.random.PRNGKey(0)
    k_feat, k_wv, k_wk = jax.random.split(root, 3)

    feature = jax.random.normal(k_feat, (B, W, T, E), jnp.float32)

    # Deterministic parameter init mirroring the module's __init__:
    wv = _xavier_uniform(k_wv, (E, E))   # v_projection.weight (out, in)
    bv = jnp.zeros((E,), jnp.float32)    # v_projection.bias
    wk = _xavier_uniform(k_wk, (E, E))   # k_projection.weight (out, in)
    bk = jnp.zeros((E,), jnp.float32)    # k_projection.bias

    # One-time prep (transpose + bf16 cast) outside the hot path.
    wk_t, wv_t, bk2, bv2 = prepare_kv_params(wk, bk, wv, bv)

    k_out, v_out = kv_feature_generator(feature, wk_t, wv_t, bk2, bv2)
    jax.block_until_ready((k_out, v_out))

    # Sanity check against plain-JAX f32 reference (tolerance loosened because
    # the kernel computes the GEMMs in bf16 with f32 accumulation).
    k_ref = feature @ wk.T + bk
    v_ref = feature @ wv.T + bv
    assert jnp.allclose(k_out, k_ref, atol=5e-2, rtol=1e-2), "k mismatch"
    assert jnp.allclose(v_out, v_ref, atol=5e-2, rtol=1e-2), "v mismatch"

    print("KERNEL_OK")
</pallas_src>

<mosaic_0001>
module attributes {stable_mosaic.version = 11 : i64} {
  func.func @_kv_kernel(%arg0: i32, %arg1: memref<64x32xf32, #tpu.memory_space<vmem>>, %arg2: memref<32x32xbf16, #tpu.memory_space<vmem>>, %arg3: memref<32x32xbf16, #tpu.memory_space<vmem>>, %arg4: memref<1x32xf32, #tpu.memory_space<vmem>>, %arg5: memref<1x32xf32, #tpu.memory_space<vmem>>, %arg6: memref<64x32xf32, #tpu.memory_space<vmem>>, %arg7: memref<64x32xf32, #tpu.memory_space<vmem>>) attributes {dimension_semantics = [#tpu.dimension_semantics<parallel>], iteration_bounds = array<i64: 1>, scalar_prefetch = 0 : i64, scratch_operands = 0 : i64, tpu.core_type = #tpu.core_type<tc>, window_params = [{transform_indices = @transform_0, window_bounds = array<i64: 64, 32>}, {pipeline_mode = #tpu.pipeline_mode<synchronous>, transform_indices = @transform_1, window_bounds = array<i64: 32, 32>}, {pipeline_mode = #tpu.pipeline_mode<synchronous>, transform_indices = @transform_2, window_bounds = array<i64: 32, 32>}, {pipeline_mode = #tpu.pipeline_mode<synchronous>, transform_indices = @transform_3, window_bounds = array<i64: 1, 32>}, {pipeline_mode = #tpu.pipeline_mode<synchronous>, transform_indices = @transform_4, window_bounds = array<i64: 1, 32>}, {transform_indices = @transform_5, window_bounds = array<i64: 64, 32>}, {transform_indices = @transform_6, window_bounds = array<i64: 64, 32>}]} {
    %c0 = arith.constant 0 : index
    %c0_0 = arith.constant 0 : index
    %0 = vector.load %arg1[%c0, %c0_0] : memref<64x32xf32, #tpu.memory_space<vmem>>, vector<64x32xf32>
    %1 = arith.truncf %0 : vector<64x32xf32> to vector<64x32xbf16>
    %c0_1 = arith.constant 0 : index
    %c0_2 = arith.constant 0 : index
    %2 = vector.load %arg2[%c0_1, %c0_2] : memref<32x32xbf16, #tpu.memory_space<vmem>>, vector<32x32xbf16>
    %cst = arith.constant dense<0.000000e+00> : vector<64x32xf32>
    %3 = tpu.matmul %1, %2, %cst {dimension_numbers = #tpu.dot_dimension_numbers<[1], [0], [0], [1], [0, 0, 1, 1], [], []>} : vector<64x32xbf16>, vector<32x32xbf16>, vector<64x32xf32> -> vector<64x32xf32>
    %c0_3 = arith.constant 0 : index
    %c0_4 = arith.constant 0 : index
    %4 = vector.load %arg4[%c0_3, %c0_4] : memref<1x32xf32, #tpu.memory_space<vmem>>, vector<1x32xf32>
    %5 = vector.broadcast %4 : vector<1x32xf32> to vector<64x32xf32>
    %6 = arith.addf %3, %5 : vector<64x32xf32>
    %c0_5 = arith.constant 0 : index
    %c0_6 = arith.constant 0 : index
    %7 = vector.load %arg6[%c0_5, %c0_6] : memref<64x32xf32, #tpu.memory_space<vmem>>, vector<64x32xf32>
    tpu.vector_store %arg6[%c0_5, %c0_6], %6 {strides = array<i32>} : memref<64x32xf32, #tpu.memory_space<vmem>>, vector<64x32xf32>,
    %c0_7 = arith.constant 0 : index
    %c0_8 = arith.constant 0 : index
    %8 = vector.load %arg3[%c0_7, %c0_8] : memref<32x32xbf16, #tpu.memory_space<vmem>>, vector<32x32xbf16>
    %cst_9 = arith.constant dense<0.000000e+00> : vector<64x32xf32>
    %9 = tpu.matmul %1, %8, %cst_9 {dimension_numbers = #tpu.dot_dimension_numbers<[1], [0], [0], [1], [0, 0, 1, 1], [], []>} : vector<64x32xbf16>, vector<32x32xbf16>, vector<64x32xf32> -> vector<64x32xf32>
    %c0_10 = arith.constant 0 : index
    %c0_11 = arith.constant 0 : index
    %10 = vector.load %arg5[%c0_10, %c0_11] : memref<1x32xf32, #tpu.memory_space<vmem>>, vector<1x32xf32>
    %11 = vector.broadcast %10 : vector<1x32xf32> to vector<64x32xf32>
    %12 = arith.addf %9, %11 : vector<64x32xf32>
    %c0_12 = arith.constant 0 : index
    %c0_13 = arith.constant 0 : index
    %13 = vector.load %arg7[%c0_12, %c0_13] : memref<64x32xf32, #tpu.memory_space<vmem>>, vector<64x32xf32>
    tpu.vector_store %arg7[%c0_12, %c0_13], %12 {strides = array<i32>} : memref<64x32xf32, #tpu.memory_space<vmem>>, vector<64x32xf32>,
    return
  }
  func.func @transform_0(%arg0: i32) -> (i32, i32) {
    %c0_i32 = arith.constant 0 : i32
    %c0_i32_0 = arith.constant 0 : i32
    return %arg0, %c0_i32 : i32, i32
  }
  func.func @transform_1(%arg0: i32) -> (i32, i32) {
    %c0_i32 = arith.constant 0 : i32
    %c0_i32_0 = arith.constant 0 : i32
    %c0_i32_1 = arith.constant 0 : i32
    return %c0_i32, %c0_i32_0 : i32, i32
  }
  func.func @transform_2(%arg0: i32) -> (i32, i32) {
    %c0_i32 = arith.constant 0 : i32
    %c0_i32_0 = arith.constant 0 : i32
    %c0_i32_1 = arith.constant 0 : i32
    return %c0_i32, %c0_i32_0 : i32, i32
  }
  func.func @transform_3(%arg0: i32) -> (i32, i32) {
    %c0_i32 = arith.constant 0 : i32
    %c0_i32_0 = arith.constant 0 : i32
    %c0_i32_1 = arith.constant 0 : i32
    return %c0_i32, %c0_i32_0 : i32, i32
  }
  func.func @transform_4(%arg0: i32) -> (i32, i32) {
    %c0_i32 = arith.constant 0 : i32
    %c0_i32_0 = arith.constant 0 : i32
    %c0_i32_1 = arith.constant 0 : i32
    return %c0_i32, %c0_i32_0 : i32, i32
  }
  func.func @transform_5(%arg0: i32) -> (i32, i32) {
    %c0_i32 = arith.constant 0 : i32
    %c0_i32_0 = arith.constant 0 : i32
    return %arg0, %c0_i32 : i32, i32
  }
  func.func @transform_6(%arg0: i32) -> (i32, i32) {
    %c0_i32 = arith.constant 0 : i32
    %c0_i32_0 = arith.constant 0 : i32
    return %arg0, %c0_i32 : i32, i32
  }
}

</mosaic_0001>

<llo_original>
// kernel: tpu_custom_call.1
$region0: #{tpu_custom_call.1}
  #allocation0 [shape = 'u32[]', space=smem, size = 0x4, offset = 0x4, fixed_abs, tag = 'smem constant byte address 0x4 - core index']
  #allocation1 [shape = 'u32[72,128]{1,0:T(1,128)}', space=vmem, size = 0x9000, scoped, tag = 'internal scratch']
  %s0 = inlined_call_operand.vmem [shape: f32[64,32], index: 0, kind: input, shape index: {}]
  %s1 = inlined_call_operand.vmem [shape: bf16[32,32], index: 1, kind: input, shape index: {}]
  %s2 = inlined_call_operand.vmem [shape: bf16[32,32], index: 2, kind: input, shape index: {}]
  %s3 = inlined_call_operand.vmem [shape: f32[1,32], index: 3, kind: input, shape index: {}]
  %s4 = inlined_call_operand.vmem [shape: f32[1,32], index: 4, kind: input, shape index: {}]
  %s5 = inlined_call_operand.vmem [shape: f32[64,32], index: 5, kind: output, shape index: {0}]
  %s6 = inlined_call_operand.vmem [shape: f32[64,32], index: 6, kind: output, shape index: {1}]
  %7 = xla_tuple %s5, %s6
  %s8 = sld [smem:[#allocation0]]
  $region38: #{tpu_custom_call.1} parent=0
    _
  %s10 = ssub.s32 1, %s8
  %s11 = scalar_select 0, %s10, %s8
  // Predicated region
  $region2: #{tpu_custom_call.1} parent=0 // pred_check
    _
  $region3: #{tpu_custom_call.1} parent=0 // pred_check_branch
    %13 = sbr.rel (0) target = $region5
  $region4: #{tpu_custom_call.1} parent=0 // pred_region
    _
  $region5: #{tpu_custom_call.1} parent=0 // pred_fallthru
    _
  // Predicated region
  $region6: #{tpu_custom_call.1} parent=0 // pred_check
    _
  $region7: #{tpu_custom_call.1} parent=0 // pred_check_branch
    %15 = sbr.rel (0) target = $region9
  $region8: #{tpu_custom_call.1} parent=0 // pred_region
    _
  $region9: #{tpu_custom_call.1} parent=0 // pred_fallthru
    _
  // Predicated region
  $region10: #{tpu_custom_call.1} parent=0 // pred_check
    _
  $region11: #{tpu_custom_call.1} parent=0 // pred_check_branch
    %17 = sbr.rel (0) target = $region13
  $region12: #{tpu_custom_call.1} parent=0 // pred_region
    _
  $region13: #{tpu_custom_call.1} parent=0 // pred_fallthru
    _
  // Predicated region
  $region14: #{tpu_custom_call.1} parent=0 // pred_check
    _
  $region15: #{tpu_custom_call.1} parent=0 // pred_check_branch
    %19 = sbr.rel (0) target = $region17
  $region16: #{tpu_custom_call.1} parent=0 // pred_region
    _
  $region17: #{tpu_custom_call.1} parent=0 // pred_fallthru
    _
  // Predicated region
  $region18: #{tpu_custom_call.1} parent=0 // pred_check
    _
  $region19: #{tpu_custom_call.1} parent=0 // pred_check_branch
    %21 = sbr.rel (0) target = $region21
  $region20: #{tpu_custom_call.1} parent=0 // pred_region
    _
  $region21: #{tpu_custom_call.1} parent=0 // pred_fallthru
    _
  %v23 = vld [vmem:[%s0] sm:$0xff]
  %v24 = vld [vmem:[%s0 + $0x8] sm:$0xff]
  %v25 = vld [vmem:[%s0 + $0x10] sm:$0xff]
  %v26 = vld [vmem:[%s0 + $0x18] sm:$0xff]
  %v27 = vld [vmem:[%s0 + $0x20] sm:$0xff]
  %v28 = vld [vmem:[%s0 + $0x28] sm:$0xff]
  %v29 = vld [vmem:[%s0 + $0x30] sm:$0xff]
  %v30 = vld [vmem:[%s0 + $0x38] sm:$0xff]
  %v31 = vpack.c.bf16 %v24, %v23
  %v32 = vpack.c.bf16 %v26, %v25
  %v33 = vpack.c.bf16 %v28, %v27
  %v34 = vpack.c.bf16 %v30, %v29
  %v35 = vld [vmem:[%s1] sm:$0xf]
  %v36 = vld [vmem:[%s1 + $0x4] sm:$0xf]
  %v37 = vld [vmem:[%s1 + $0x8] sm:$0xf]
  %v38 = vld [vmem:[%s1 + $0xc] sm:$0xf]
  %v39 = vld [vmem:[%s3] sm:$0x1]
  %v41 = vperm.slane %v39, 0
  %v47 = vunpack.c.l.b16 %v35
  %v48 = vunpack.c.l.b16 %v36
  %v49 = vunpack.c.l.b16 %v37
  %v50 = vunpack.c.l.b16 %v38
  %v51 = vpack.c.b16 %v48, %v47
  %v52 = vpack.c.b16 %v50, %v49
  %vm55 = vcmask 261120
  %v57 = vsel %vm55, %v31, 0
  %v60 = vsel %vm55, %v32, 0
  %v63 = vsel %vm55, %v33, 0
  %v66 = vsel %vm55, %v34, 0
  %68 = vmatpush.bf16.msra.mxu0 0
  %69 = vmatpush.bf16.msra.mxu0 0
  %70 = vmatpush.bf16.msra.mxu0 0
  %71 = vmatpush.bf16.msra.mxu0 0
  %72 = vmatpush.bf16.msra.mxu0 0
  %73 = vmatpush.bf16.msra.mxu0 0
  %74 = vmatpush.bf16.msra.mxu0 %v52
  %75 = vmatpush.bf16.msra.mxu0 %v51
  %76 = vmatmul.bf16.gmra.mxu0 %v57
  %v77 = vpop.f32.mrf.mxu0
  %v78 = vadd.f32 %v41, %v77
  %v79 = vpop.f32.mrf.mxu0
  %v80 = vadd.f32 %v41, %v79
  %81 = vmatmul.bf16.gmra.mxu0 %v60
  %v82 = vpop.f32.mrf.mxu0
  %v83 = vadd.f32 %v41, %v82
  %v84 = vpop.f32.mrf.mxu0
  %v85 = vadd.f32 %v41, %v84
  %86 = vmatmul.bf16.gmra.mxu0 %v63
  %v87 = vpop.f32.mrf.mxu0
  %v88 = vadd.f32 %v41, %v87
  %v89 = vpop.f32.mrf.mxu0
  %v90 = vadd.f32 %v41, %v89
  %91 = vmatmul.bf16.gmra.mxu0 %v66
  %v92 = vpop.f32.mrf.mxu0
  %v93 = vadd.f32 %v41, %v92
  %v94 = vpop.f32.mrf.mxu0
  %v95 = vadd.f32 %v41, %v94
  %96 = vdwg.mxu0
  %97 = vst.msk [vmem:[%s5] sm:$0xff] %vm55, %v78
  %98 = vst.msk [vmem:[%s5 + $0x8] sm:$0xff] %vm55, %v80
  %99 = vst.msk [vmem:[%s5 + $0x10] sm:$0xff] %vm55, %v83
  %100 = vst.msk [vmem:[%s5 + $0x18] sm:$0xff] %vm55, %v85
  %101 = vst.msk [vmem:[%s5 + $0x20] sm:$0xff] %vm55, %v88
  %102 = vst.msk [vmem:[%s5 + $0x28] sm:$0xff] %vm55, %v90
  %103 = vst.msk [vmem:[%s5 + $0x30] sm:$0xff] %vm55, %v93
  %104 = vst.msk [vmem:[%s5 + $0x38] sm:$0xff] %vm55, %v95
  %v105 = vld [vmem:[%s2] sm:$0xf]
  %v106 = vld [vmem:[%s2 + $0x4] sm:$0xf]
  %v107 = vld [vmem:[%s2 + $0x8] sm:$0xf]
  %v108 = vld [vmem:[%s2 + $0xc] sm:$0xf]
  %v109 = vld [vmem:[%s4] sm:$0x1]
  %v111 = vperm.slane %v109, 0
  %v117 = vunpack.c.l.b16 %v105
  %v118 = vunpack.c.l.b16 %v106
  %v119 = vunpack.c.l.b16 %v107
  %v120 = vunpack.c.l.b16 %v108
  %v121 = vpack.c.b16 %v118, %v117
  %v122 = vpack.c.b16 %v120, %v119
  %125 = vmatpush.bf16.msra.mxu0 0
  %126 = vmatpush.bf16.msra.mxu0 0
  %127 = vmatpush.bf16.msra.mxu0 0
  %128 = vmatpush.bf16.msra.mxu0 0
  %129 = vmatpush.bf16.msra.mxu0 0
  %130 = vmatpush.bf16.msra.mxu0 0
  %131 = vmatpush.bf16.msra.mxu0 %v122
  %132 = vmatpush.bf16.msra.mxu0 %v121
  %133 = vmatmul.bf16.gmra.mxu0 %v57
  %v134 = vpop.f32.mrf.mxu0
  %v135 = vadd.f32 %v111, %v134
  %v136 = vpop.f32.mrf.mxu0
  %v137 = vadd.f32 %v111, %v136
  %138 = vmatmul.bf16.gmra.mxu0 %v60
  %v139 = vpop.f32.mrf.mxu0
  %v140 = vadd.f32 %v111, %v139
  %v141 = vpop.f32.mrf.mxu0
  %v142 = vadd.f32 %v111, %v141
  %143 = vmatmul.bf16.gmra.mxu0 %v63
  %v144 = vpop.f32.mrf.mxu0
  %v145 = vadd.f32 %v111, %v144
  %v146 = vpop.f32.mrf.mxu0
  %v147 = vadd.f32 %v111, %v146
  %148 = vmatmul.bf16.gmra.mxu0 %v66
  %v149 = vpop.f32.mrf.mxu0
  %v150 = vadd.f32 %v111, %v149
  %v151 = vpop.f32.mrf.mxu0
  %v152 = vadd.f32 %v111, %v151
  %153 = vdwg.mxu0
  %154 = vst.msk [vmem:[%s6] sm:$0xff] %vm55, %v135
  %155 = vst.msk [vmem:[%s6 + $0x8] sm:$0xff] %vm55, %v137
  %156 = vst.msk [vmem:[%s6 + $0x10] sm:$0xff] %vm55, %v140
  %157 = vst.msk [vmem:[%s6 + $0x18] sm:$0xff] %vm55, %v142
  %158 = vst.msk [vmem:[%s6 + $0x20] sm:$0xff] %vm55, %v145
  %159 = vst.msk [vmem:[%s6 + $0x28] sm:$0xff] %vm55, %v147
  %160 = vst.msk [vmem:[%s6 + $0x30] sm:$0xff] %vm55, %v150
  %161 = vst.msk [vmem:[%s6 + $0x38] sm:$0xff] %vm55, %v152
  // Predicated region
  $region22: #{tpu_custom_call.1} parent=0 // pred_check
    _
  $region23: #{tpu_custom_call.1} parent=0 // pred_check_branch
    %163 = sbr.rel (0) target = $region25
  $region24: #{tpu_custom_call.1} parent=0 // pred_region
    _
  $region25: #{tpu_custom_call.1} parent=0 // pred_fallthru
    _
  // Predicated region
  $region26: #{tpu_custom_call.1} parent=0 // pred_check
    _
  $region27: #{tpu_custom_call.1} parent=0 // pred_check_branch
    %165 = sbr.rel (0) target = $region29
  $region28: #{tpu_custom_call.1} parent=0 // pred_region
    _
  $region29: #{tpu_custom_call.1} parent=0 // pred_fallthru
    _
  // Predicated region
  $region30: #{tpu_custom_call.1} parent=0 // pred_check
    _
  $region31: #{tpu_custom_call.1} parent=0 // pred_check_branch
    %167 = sbr.rel (0) target = $region33
  $region32: #{tpu_custom_call.1} parent=0 // pred_region
    _
  $region33: #{tpu_custom_call.1} parent=0 // pred_fallthru
    _
  // Predicated region
  $region34: #{tpu_custom_call.1} parent=0 // pred_check
    _
  $region35: #{tpu_custom_call.1} parent=0 // pred_check_branch
    %169 = sbr.rel (0) target = $region37
  $region36: #{tpu_custom_call.1} parent=0 // pred_region
    _
  $region37: #{tpu_custom_call.1} parent=0 // pred_fallthru
    _

</llo_original>
